<compile_context>
chip_gen: v5e
topology: v5e:2x2
jax: 0.10.0
libtpu: 0.0.40
codegen_flags: <defaults>
</compile_context>

<pallas_src>
import functools

import jax
import jax.numpy as jnp
from jax.experimental import pallas as pl
from jax.experimental.pallas import tpu as pltpu

EPS = 1e-5


# --------------------------------------------------------------------------- #
# VMEM / tiling helpers
# --------------------------------------------------------------------------- #
@functools.lru_cache(maxsize=1)
def _vmem_limit_bytes():
    """Generation-aware VMEM budget with ~25% headroom for the compiler."""
    try:
        cap = int(pltpu.get_tpu_info().vmem_capacity_bytes)
    except Exception:  # not on a TPU yet / older jax — be conservative
        cap = 64 * 1024 * 1024
    # v7x: 64 MiB -> 48 MiB;  v5e/v6e: 128 MiB -> 96 MiB (capped at 100 MiB).
    return min(cap * 3 // 4, 100 * 1024 * 1024)


def _fused_channel_tile(N, C, L, itemsize, vmem_limit, target_block_bytes):
    """Largest channel tile TC for the fused path, or None if it can't fit.

    Live bytes per block element: double-buffered input + output blocks in the
    input dtype plus ~2 full-tile f32 compute temporaries (x upcast, centered x).
    """
    headroom = vmem_limit * 3 // 4
    per_elem = 4 * itemsize + 8
    fit_tc = (headroom // per_elem) // max(1, N * L)      # hard VMEM fit
    if fit_tc < 1:
        return None
    soft_tc = max(1, target_block_bytes // max(1, N * L * itemsize))  # granularity

    def pick(upper):
        # TC must divide C and be a multiple of 8 (sublane) or equal to C.
        for t in range(min(C, upper), 0, -1):
            if C % t == 0 and (t == C or t % 8 == 0):
                return t
        return None

    return pick(min(fit_tc, soft_tc)) or pick(fit_tc)


def _pick_tiles(N, C, L, itemsize, target_bytes, prefer_multi_n):
    """Pick (TN, TL): TN | N, TL | L, TL lane-dense (multiple of 128 or full L)."""
    TL = L
    if L % 128 == 0 and C * L * itemsize > target_bytes:
        TL = 128
        for t in (4096, 2048, 1024, 512, 256, 128):
            if L % t == 0 and C * t * itemsize <= target_bytes:
                TL = t
                break
    max_tn = max(1, target_bytes // max(1, C * TL * itemsize))
    if prefer_multi_n:
        # Keep >= 2 steps on the parallel axis so v7x's two TensorCores both
        # stream HBM in the stats pass (free on single-TC v5e/v6e).
        max_tn = min(max_tn, max(1, N // 2))
    TN = 1
    for t in range(min(N, max_tn), 0, -1):
        if N % t == 0:
            TN = t
            break
    return TN, TL


# --------------------------------------------------------------------------- #
# Kernels
# --------------------------------------------------------------------------- #
def _fused_kernel(x_ref, w_ref, b_ref, o_ref, *, eps, count):
    """Single HBM pass: stats + normalize from one resident (N, TC, L) block."""
    x = x_ref[...].astype(jnp.float32)
    inv_n = jnp.float32(1.0 / count)
    mean = jnp.sum(x, axis=(0, 2), keepdims=True) * inv_n          # (1, TC, 1)
    xc = x - mean
    var = jnp.sum(xc * xc, axis=(0, 2), keepdims=True) * inv_n     # centered: no cancellation
    inv_std = jax.lax.rsqrt(var + eps)
    scale = w_ref[...].astype(jnp.float32) * inv_std
    o_ref[...] = (xc * scale + b_ref[...].astype(jnp.float32)).astype(o_ref.dtype)


def _stats_kernel(x_ref, sum_ref, sq_ref):
    """Pass 1: per-channel partial sum / sum-of-squares, accumulated over L tiles."""
    @pl.when(pl.program_id(1) == 0)
    def _init():
        sum_ref[...] = jnp.zeros_like(sum_ref)
        sq_ref[...] = jnp.zeros_like(sq_ref)

    x = x_ref[...].astype(jnp.float32)                   # (TN, C, TL)
    s = jnp.sum(x, axis=2, keepdims=True)                # lane (XLU) reduce
    sq = jnp.sum(x * x, axis=2, keepdims=True)
    sum_ref[...] += jnp.sum(s, axis=0, keepdims=True)    # batch-tile (VPU) reduce
    sq_ref[...] += jnp.sum(sq, axis=0, keepdims=True)


def _normalize_kernel(x_ref, scale_ref, shift_ref, o_ref):
    """Pass 2: streaming y = x * scale[c] + shift[c]."""
    x = x_ref[...].astype(jnp.float32)
    o_ref[...] = (x * scale_ref[...] + shift_ref[...]).astype(o_ref.dtype)


# --------------------------------------------------------------------------- #
# Wrapper
# --------------------------------------------------------------------------- #
def _fused_call(x, wv, bv, eps, tc, vmem_limit):
    N, C, L = x.shape
    itemsize = jnp.dtype(x.dtype).itemsize
    nC = C // tc
    kernel = functools.partial(_fused_kernel, eps=eps, count=float(N * L))
    return pl.pallas_call(
        kernel,
        out_shape=jax.ShapeDtypeStruct((N, C, L), x.dtype),
        grid_spec=pltpu.PrefetchScalarGridSpec(
            num_scalar_prefetch=0,
            grid=(nC,),
            in_specs=[
                pl.BlockSpec((N, tc, L), lambda c: (0, c, 0)),
                pl.BlockSpec((1, tc, 1), lambda c: (0, c, 0)),
                pl.BlockSpec((1, tc, 1), lambda c: (0, c, 0)),
            ],
            out_specs=pl.BlockSpec((N, tc, L), lambda c: (0, c, 0)),
        ),
        compiler_params=pltpu.CompilerParams(
            dimension_semantics=("parallel",),
            vmem_limit_bytes=vmem_limit,
        ),
        cost_estimate=pl.CostEstimate(
            flops=7 * N * C * L,
            transcendentals=C,
            bytes_accessed=2 * N * C * L * itemsize,
        ),
    )(x, wv, bv)


def _two_pass_call(x, wv, bv, eps, vmem_limit, block_target_bytes):
    N, C, L = x.shape
    itemsize = jnp.dtype(x.dtype).itemsize
    headroom = vmem_limit * 3 // 4
    # Pass 1: only the input block is double-buffered (outputs are (1,C,1));
    # also budget the in-kernel f32 upcast + x*x temporaries (~8 B/elem).
    t1 = min((headroom // (2 * itemsize + 8)) * itemsize, 16 << 20)
    # Pass 2: input AND output double-buffered + f32 temporaries.
    t2 = min((headroom // (4 * itemsize + 8)) * itemsize, 8 << 20)
    if block_target_bytes is not None:
        t1 = min(t1, block_target_bytes)
        t2 = min(t2, block_target_bytes)

    TN1, TL1 = _pick_tiles(N, C, L, itemsize, t1, prefer_multi_n=True)
    TN2, TL2 = _pick_tiles(N, C, L, itemsize, t2, prefer_multi_n=False)
    nN1, nL1 = N // TN1, L // TL1
    nN2, nL2 = N // TN2, L // TL2

    # ---- Pass 1: per-channel partial sums / sums of squares ----------------
    psum, psq = pl.pallas_call(
        _stats_kernel,
        out_shape=(
            jax.ShapeDtypeStruct((nN1, C, 1), jnp.float32),
            jax.ShapeDtypeStruct((nN1, C, 1), jnp.float32),
        ),
        grid_spec=pltpu.PrefetchScalarGridSpec(
            num_scalar_prefetch=0,
            grid=(nN1, nL1),
            in_specs=[pl.BlockSpec((TN1, C, TL1), lambda i, j: (i, 0, j))],
            out_specs=[
                pl.BlockSpec((1, C, 1), lambda i, j: (i, 0, 0)),
                pl.BlockSpec((1, C, 1), lambda i, j: (i, 0, 0)),
            ],
        ),
        compiler_params=pltpu.CompilerParams(
            dimension_semantics=("parallel", "arbitrary"),
            vmem_limit_bytes=vmem_limit,
        ),
        cost_estimate=pl.CostEstimate(
            flops=3 * N * C * L,
            transcendentals=0,
            bytes_accessed=N * C * L * itemsize,
        ),
    )(x)

    # ---- Tiny per-channel finalize (plain JAX, only C elements) ------------
    count = jnp.float32(N * L)
    total = jnp.sum(psum, axis=0).reshape(C)
    total_sq = jnp.sum(psq, axis=0).reshape(C)
    mean = total / count
    # TODO(synk): E[x^2]-mean^2 in f32 can cancel when |mean| >> std; the fused
    # path uses centered variance and is preferred whenever it fits VMEM.
    var = jnp.maximum(total_sq / count - mean * mean, 0.0)
    inv_std = jax.lax.rsqrt(var + eps)
    scale_v = wv.reshape(C).astype(jnp.float32) * inv_std
    shift_v = bv.reshape(C).astype(jnp.float32) - mean * scale_v
    scale = scale_v.reshape(1, C, 1)
    shift = shift_v.reshape(1, C, 1)

    # ---- Pass 2: streaming normalize  y = x * scale + shift ----------------
    y = pl.pallas_call(
        _normalize_kernel,
        out_shape=jax.ShapeDtypeStruct((N, C, L), x.dtype),
        grid_spec=pltpu.PrefetchScalarGridSpec(
            num_scalar_prefetch=0,
            grid=(nN2, nL2),
            in_specs=[
                pl.BlockSpec((TN2, C, TL2), lambda i, j: (i, 0, j)),
                pl.BlockSpec((1, C, 1), lambda i, j: (0, 0, 0)),
                pl.BlockSpec((1, C, 1), lambda i, j: (0, 0, 0)),
            ],
            out_specs=pl.BlockSpec((TN2, C, TL2), lambda i, j: (i, 0, j)),
        ),
        compiler_params=pltpu.CompilerParams(
            dimension_semantics=("parallel", "parallel"),
            vmem_limit_bytes=vmem_limit,
        ),
        cost_estimate=pl.CostEstimate(
            flops=2 * N * C * L,
            transcendentals=0,
            bytes_accessed=2 * N * C * L * itemsize,
        ),
    )(x, scale, shift)
    return y


def batch_norm_forward(x, weight, bias, eps=EPS, *, use_fused=None,
                       block_target_bytes=None):
    """Training-mode BatchNorm1d forward. x: (N, C, L); weight/bias: (C,).

    use_fused: None = auto (fused single-pass when the channel slab fits VMEM),
               True/False to force a path.
    block_target_bytes: optional soft cap on per-block bytes (testing / tuning).
    """
    # TODO(synk): 2-D (N, C) inputs and running_mean/running_var buffer updates
    # (momentum) are not implemented; they do not affect this training forward.
    N, C, L = x.shape
    itemsize = jnp.dtype(x.dtype).itemsize
    vmem_limit = _vmem_limit_bytes()

    wv = weight.reshape(1, C, 1)
    bv = bias.reshape(1, C, 1)

    if use_fused is not False:
        tc = _fused_channel_tile(N, C, L, itemsize, vmem_limit,
                                 block_target_bytes or (16 << 20))
        if tc is not None:
            return _fused_call(x, wv, bv, eps, tc, vmem_limit)
        if use_fused is True:
            raise ValueError("fused BatchNorm path does not fit VMEM for this shape")

    return _two_pass_call(x, wv, bv, eps, vmem_limit, block_target_bytes)


if __name__ == "__main__":
    key = jax.random.PRNGKey(0)
    kx, kw, kb = jax.random.split(key, 3)
    N, C, L = 8, 16, 512
    x = 3.0 + 2.0 * jax.random.normal(kx, (N, C, L), dtype=jnp.float32)
    weight = 1.0 + 0.1 * jax.random.normal(kw, (C,), dtype=jnp.float32)
    bias = 0.1 * jax.random.normal(kb, (C,), dtype=jnp.float32)

    # Plain-JAX reference of BatchNorm1d training-mode forward.
    mean = jnp.mean(x, axis=(0, 2), keepdims=True)
    var = jnp.mean((x - mean) ** 2, axis=(0, 2), keepdims=True)
    y_ref = (x - mean) / jnp.sqrt(var + EPS) * weight[None, :, None] + bias[None, :, None]

    def check(y):
        jax.block_until_ready(y)
        assert y.shape == (N, C, L) and y.dtype == x.dtype
        err = float(jnp.max(jnp.abs(y - y_ref)))
        assert err < 1e-4, err

    # 1) Default: fused single-pass path (whole channel slab resident in VMEM).
    check(batch_norm_forward(x, weight, bias))
    # 2) Fused path with >= 2 channel blocks (exercises the channel grid).
    check(batch_norm_forward(x, weight, bias, use_fused=True,
                             block_target_bytes=128 * 1024))
    # 3) Forced two-pass fallback with small blocks (exercises the partial-sum
    #    accumulation over the "arbitrary" L axis and the normalize pass).
    check(batch_norm_forward(x, weight, bias, use_fused=False,
                             block_target_bytes=16 * 1024))

    print("KERNEL_OK")
</pallas_src>

<mosaic_0001>
module attributes {stable_mosaic.version = 11 : i64} {
  func.func @_fused_kernel(%arg0: i32, %arg1: memref<8x16x512xf32, #tpu.memory_space<vmem>>, %arg2: memref<1x16x1xf32, #tpu.memory_space<vmem>>, %arg3: memref<1x16x1xf32, #tpu.memory_space<vmem>>, %arg4: memref<8x16x512xf32, #tpu.memory_space<vmem>>) attributes {dimension_semantics = [#tpu.dimension_semantics<parallel>], iteration_bounds = array<i64: 1>, scalar_prefetch = 0 : i64, scratch_operands = 0 : i64, tpu.core_type = #tpu.core_type<tc>, window_params = [{transform_indices = @transform_0, window_bounds = array<i64: 8, 16, 512>}, {transform_indices = @transform_1, window_bounds = array<i64: 1, 16, 1>}, {transform_indices = @transform_2, window_bounds = array<i64: 1, 16, 1>}, {transform_indices = @transform_3, window_bounds = array<i64: 8, 16, 512>}]} {
    %c0 = arith.constant 0 : index
    %c0_0 = arith.constant 0 : index
    %c0_1 = arith.constant 0 : index
    %0 = vector.load %arg1[%c0, %c0_0, %c0_1] : memref<8x16x512xf32, #tpu.memory_space<vmem>>, vector<8x16x512xf32>
    %cst = arith.constant dense<0.000000e+00> : vector<16xf32>
    %1 = vector.multi_reduction <add>, %0, %cst [0, 2] : vector<8x16x512xf32> to vector<16xf32>
    %2 = vector.shape_cast %1 : vector<16xf32> to vector<1x16x1xf32>
    %cst_2 = arith.constant 2.44140625E-4 : f32
    %3 = vector.broadcast %cst_2 : f32 to vector<1x16x1xf32>
    %4 = arith.mulf %2, %3 : vector<1x16x1xf32>
    %5 = vector.broadcast %4 : vector<1x16x1xf32> to vector<8x16x512xf32>
    %6 = arith.subf %0, %5 : vector<8x16x512xf32>
    %7 = arith.mulf %6, %6 : vector<8x16x512xf32>
    %cst_3 = arith.constant dense<0.000000e+00> : vector<16xf32>
    %8 = vector.multi_reduction <add>, %7, %cst_3 [0, 2] : vector<8x16x512xf32> to vector<16xf32>
    %9 = vector.shape_cast %8 : vector<16xf32> to vector<1x16x1xf32>
    %cst_4 = arith.constant 2.44140625E-4 : f32
    %10 = vector.broadcast %cst_4 : f32 to vector<1x16x1xf32>
    %11 = arith.mulf %9, %10 : vector<1x16x1xf32>
    %cst_5 = arith.constant 9.99999974E-6 : f32
    %12 = vector.broadcast %cst_5 : f32 to vector<1x16x1xf32>
    %13 = arith.addf %11, %12 : vector<1x16x1xf32>
    %14 = math.rsqrt %13 : vector<1x16x1xf32>
    %c0_6 = arith.constant 0 : index
    %c0_7 = arith.constant 0 : index
    %c0_8 = arith.constant 0 : index
    %15 = vector.load %arg2[%c0_6, %c0_7, %c0_8] : memref<1x16x1xf32, #tpu.memory_space<vmem>>, vector<1x16x1xf32>
    %16 = arith.mulf %15, %14 : vector<1x16x1xf32>
    %17 = vector.broadcast %16 : vector<1x16x1xf32> to vector<8x16x512xf32>
    %18 = arith.mulf %6, %17 : vector<8x16x512xf32>
    %c0_9 = arith.constant 0 : index
    %c0_10 = arith.constant 0 : index
    %c0_11 = arith.constant 0 : index
    %19 = vector.load %arg3[%c0_9, %c0_10, %c0_11] : memref<1x16x1xf32, #tpu.memory_space<vmem>>, vector<1x16x1xf32>
    %20 = vector.broadcast %19 : vector<1x16x1xf32> to vector<8x16x512xf32>
    %21 = arith.addf %18, %20 : vector<8x16x512xf32>
    %c0_12 = arith.constant 0 : index
    %c0_13 = arith.constant 0 : index
    %c0_14 = arith.constant 0 : index
    %22 = vector.load %arg4[%c0_12, %c0_13, %c0_14] : memref<8x16x512xf32, #tpu.memory_space<vmem>>, vector<8x16x512xf32>
    tpu.vector_store %arg4[%c0_12, %c0_13, %c0_14], %21 {strides = array<i32>} : memref<8x16x512xf32, #tpu.memory_space<vmem>>, vector<8x16x512xf32>,
    return
  }
  func.func @transform_0(%arg0: i32) -> (i32, i32, i32) {
    %c0_i32 = arith.constant 0 : i32
    %c0_i32_0 = arith.constant 0 : i32
    %c0_i32_1 = arith.constant 0 : i32
    return %c0_i32, %arg0, %c0_i32_0 : i32, i32, i32
  }
  func.func @transform_1(%arg0: i32) -> (i32, i32, i32) {
    %c0_i32 = arith.constant 0 : i32
    %c0_i32_0 = arith.constant 0 : i32
    %c0_i32_1 = arith.constant 0 : i32
    return %c0_i32, %arg0, %c0_i32_0 : i32, i32, i32
  }
  func.func @transform_2(%arg0: i32) -> (i32, i32, i32) {
    %c0_i32 = arith.constant 0 : i32
    %c0_i32_0 = arith.constant 0 : i32
    %c0_i32_1 = arith.constant 0 : i32
    return %c0_i32, %arg0, %c0_i32_0 : i32, i32, i32
  }
  func.func @transform_3(%arg0: i32) -> (i32, i32, i32) {
    %c0_i32 = arith.constant 0 : i32
    %c0_i32_0 = arith.constant 0 : i32
    %c0_i32_1 = arith.constant 0 : i32
    return %c0_i32, %arg0, %c0_i32_0 : i32, i32, i32
  }
}

</mosaic_0001>

<llo_original>
// kernel: tpu_custom_call.1
$region0: #{tpu_custom_call.1}
  #allocation0 [shape = 'u32[]', space=smem, size = 0x4, offset = 0x4, fixed_abs, tag = 'smem constant byte address 0x4 - core index']
  #allocation1 [shape = 'u32[72,128]{1,0:T(1,128)}', space=vmem, size = 0x9000, scoped, tag = 'internal scratch']
  %s0 = inlined_call_operand.hbm [shape: f32[8,16,512], index: 0, kind: input, shape index: {}]
  %s1 = inlined_call_operand.vmem [shape: f32[1,16,1], index: 1, kind: input, shape index: {}]
  %s2 = inlined_call_operand.vmem [shape: f32[1,16,1], index: 2, kind: input, shape index: {}]
  %s3 = inlined_call_operand.hbm [shape: f32[8,16,512], index: 3, kind: output, shape index: {}]
  %s4 = sld [smem:[#allocation0]]
  $region26: #{tpu_custom_call.1} parent=0
    _
  %s6 = ssub.s32 1, %s4
  %s7 = scalar_select 0, %s6, %s4
  $region1: #{tpu_custom_call.1} parent=0
    #allocation2 [shape = 'u8[262144]{0}', space=vmem, size = 0x40000, scoped, tag = 'input window, operand 0, single buffered']
    #allocation3 [shape = 's32[1]{0}', space=sflag, size = 0x4, scoped, tag = 'scoped memory for tpu_custom_call.1']
    #allocation4 [shape = 's32[1]{0}', space=sflag, size = 0x4, scoped, tag = 'scoped memory for tpu_custom_call.1']
    #allocation5 [shape = 'u8[262144]{0}', space=vmem, size = 0x40000, scoped, tag = 'output window, operand 0, single buffered']
    %8 = vsyncpa [#allocation3], 0
    %9 = vsyncpa [#allocation4], 0
    // Predicated region
    $region2: #{tpu_custom_call.1} parent=1 // pred_check
      _
    $region3: #{tpu_custom_call.1} parent=1 // pred_check_branch
      %11 = sbr.rel (0) target = $region5
    $region4: #{tpu_custom_call.1} parent=1 // pred_region
      %13 = vsyncadd [#allocation3], 0
      %s14 = sshll.u32 %s0, 4
      %s15 = int_to_ptr.hbm [resolvable:$true] %s14
      %s16 = sshll.u32 [#allocation2], 4
      %s17 = int_to_ptr.vmem [resolvable:$true] %s16
      %22 = dma.hbm_to_vmem [thread:$0]  %s15, 8192, %s17, [#allocation3], 512, 512, 32
    $region5: #{tpu_custom_call.1} parent=1 // pred_fallthru
      _
    // Predicated region
    $region6: #{tpu_custom_call.1} parent=1 // pred_check
      _
    $region7: #{tpu_custom_call.1} parent=1 // pred_check_branch
      %24 = sbr.rel (0) target = $region9
    $region8: #{tpu_custom_call.1} parent=1 // pred_region
      _
    $region9: #{tpu_custom_call.1} parent=1 // pred_fallthru
      _
    // Predicated region
    $region10: #{tpu_custom_call.1} parent=1 // pred_check
      _
    $region11: #{tpu_custom_call.1} parent=1 // pred_check_branch
      %26 = sbr.rel (0) target = $region13
    $region12: #{tpu_custom_call.1} parent=1 // pred_region
      _
    $region13: #{tpu_custom_call.1} parent=1 // pred_fallthru
      _
    // Predicated region
    $region14: #{tpu_custom_call.1} parent=1 // pred_check
      _
    $region15: #{tpu_custom_call.1} parent=1 // pred_check_branch
      %28 = sbr.rel (0) target = $region17
    $region16: #{tpu_custom_call.1} parent=1 // pred_region
      %30 = dma.done [#allocation3], 8192
    $region17: #{tpu_custom_call.1} parent=1 // pred_fallthru
      _
    %v31 = vld [vmem:[#allocation2] sm:$0xff]
    %v32 = vld [vmem:[#allocation2 + $0x8] sm:$0xff]
    %v33 = vld [vmem:[#allocation2 + $0x10] sm:$0xff]
    %v34 = vld [vmem:[#allocation2 + $0x18] sm:$0xff]
    %v35 = vld [vmem:[#allocation2 + $0x20] sm:$0xff]
    %v36 = vld [vmem:[#allocation2 + $0x28] sm:$0xff]
    %v37 = vld [vmem:[#allocation2 + $0x30] sm:$0xff]
    %v38 = vld [vmem:[#allocation2 + $0x38] sm:$0xff]
    %v39 = vld [vmem:[#allocation2 + $0x40] sm:$0xff]
    %v40 = vld [vmem:[#allocation2 + $0x48] sm:$0xff]
    %v41 = vld [vmem:[#allocation2 + $0x50] sm:$0xff]
    %v42 = vld [vmem:[#allocation2 + $0x58] sm:$0xff]
    %v43 = vld [vmem:[#allocation2 + $0x60] sm:$0xff]
    %v44 = vld [vmem:[#allocation2 + $0x68] sm:$0xff]
    %v45 = vld [vmem:[#allocation2 + $0x70] sm:$0xff]
    %v46 = vld [vmem:[#allocation2 + $0x78] sm:$0xff]
    %v47 = vld [vmem:[#allocation2 + $0x80] sm:$0xff]
    %v48 = vld [vmem:[#allocation2 + $0x88] sm:$0xff]
    %v49 = vld [vmem:[#allocation2 + $0x90] sm:$0xff]
    %v50 = vld [vmem:[#allocation2 + $0x98] sm:$0xff]
    %v51 = vld [vmem:[#allocation2 + $0xa0] sm:$0xff]
    %v52 = vld [vmem:[#allocation2 + $0xa8] sm:$0xff]
    %v53 = vld [vmem:[#allocation2 + $0xb0] sm:$0xff]
    %v54 = vld [vmem:[#allocation2 + $0xb8] sm:$0xff]
    %v55 = vld [vmem:[#allocation2 + $0xc0] sm:$0xff]
    %v56 = vld [vmem:[#allocation2 + $0xc8] sm:$0xff]
    %v57 = vld [vmem:[#allocation2 + $0xd0] sm:$0xff]
    %v58 = vld [vmem:[#allocation2 + $0xd8] sm:$0xff]
    %v59 = vld [vmem:[#allocation2 + $0xe0] sm:$0xff]
    %v60 = vld [vmem:[#allocation2 + $0xe8] sm:$0xff]
    %v61 = vld [vmem:[#allocation2 + $0xf0] sm:$0xff]
    %v62 = vld [vmem:[#allocation2 + $0xf8] sm:$0xff]
    %v63 = vld [vmem:[#allocation2 + $0x100] sm:$0xff]
    %v64 = vld [vmem:[#allocation2 + $0x108] sm:$0xff]
    %v65 = vld [vmem:[#allocation2 + $0x110] sm:$0xff]
    %v66 = vld [vmem:[#allocation2 + $0x118] sm:$0xff]
    %v67 = vld [vmem:[#allocation2 + $0x120] sm:$0xff]
    %v68 = vld [vmem:[#allocation2 + $0x128] sm:$0xff]
    %v69 = vld [vmem:[#allocation2 + $0x130] sm:$0xff]
    %v70 = vld [vmem:[#allocation2 + $0x138] sm:$0xff]
    %v71 = vld [vmem:[#allocation2 + $0x140] sm:$0xff]
    %v72 = vld [vmem:[#allocation2 + $0x148] sm:$0xff]
    %v73 = vld [vmem:[#allocation2 + $0x150] sm:$0xff]
    %v74 = vld [vmem:[#allocation2 + $0x158] sm:$0xff]
    %v75 = vld [vmem:[#allocation2 + $0x160] sm:$0xff]
    %v76 = vld [vmem:[#allocation2 + $0x168] sm:$0xff]
    %v77 = vld [vmem:[#allocation2 + $0x170] sm:$0xff]
    %v78 = vld [vmem:[#allocation2 + $0x178] sm:$0xff]
    %v79 = vld [vmem:[#allocation2 + $0x180] sm:$0xff]
    %v80 = vld [vmem:[#allocation2 + $0x188] sm:$0xff]
    %v81 = vld [vmem:[#allocation2 + $0x190] sm:$0xff]
    %v82 = vld [vmem:[#allocation2 + $0x198] sm:$0xff]
    %v83 = vld [vmem:[#allocation2 + $0x1a0] sm:$0xff]
    %v84 = vld [vmem:[#allocation2 + $0x1a8] sm:$0xff]
    %v85 = vld [vmem:[#allocation2 + $0x1b0] sm:$0xff]
    %v86 = vld [vmem:[#allocation2 + $0x1b8] sm:$0xff]
    %v87 = vld [vmem:[#allocation2 + $0x1c0] sm:$0xff]
    %v88 = vld [vmem:[#allocation2 + $0x1c8] sm:$0xff]
    %v89 = vld [vmem:[#allocation2 + $0x1d0] sm:$0xff]
    %v90 = vld [vmem:[#allocation2 + $0x1d8] sm:$0xff]
    %v91 = vld [vmem:[#allocation2 + $0x1e0] sm:$0xff]
    %v92 = vld [vmem:[#allocation2 + $0x1e8] sm:$0xff]
    %v93 = vld [vmem:[#allocation2 + $0x1f0] sm:$0xff]
    %v94 = vld [vmem:[#allocation2 + $0x1f8] sm:$0xff]
    %v95 = vadd.f32 %v31, %v32
    %v96 = vadd.f32 %v95, %v33
    %v97 = vadd.f32 %v96, %v34
    %v98 = vadd.f32 %v97, %v39
    %v99 = vadd.f32 %v98, %v40
    %v100 = vadd.f32 %v99, %v41
    %v101 = vadd.f32 %v100, %v42
    %v102 = vadd.f32 %v101, %v47
    %v103 = vadd.f32 %v102, %v48
    %v104 = vadd.f32 %v103, %v49
    %v105 = vadd.f32 %v104, %v50
    %v106 = vadd.f32 %v105, %v55
    %v107 = vadd.f32 %v106, %v56
    %v108 = vadd.f32 %v107, %v57
    %v109 = vadd.f32 %v108, %v58
    %v110 = vadd.f32 %v109, %v63
    %v111 = vadd.f32 %v110, %v64
    %v112 = vadd.f32 %v111, %v65
    %v113 = vadd.f32 %v112, %v66
    %v114 = vadd.f32 %v113, %v71
    %v115 = vadd.f32 %v114, %v72
    %v116 = vadd.f32 %v115, %v73
    %v117 = vadd.f32 %v116, %v74
    %v118 = vadd.f32 %v117, %v79
    %v119 = vadd.f32 %v118, %v80
    %v120 = vadd.f32 %v119, %v81
    %v121 = vadd.f32 %v120, %v82
    %v122 = vadd.f32 %v121, %v87
    %v123 = vadd.f32 %v122, %v88
    %v124 = vadd.f32 %v123, %v89
    %v125 = vadd.f32 %v124, %v90
    %126 = vadd.xlane.f32.xlu0 %v125
    %v127 = vpop.xlane.xlu0 %126
    %v128 = vadd.f32 %v35, %v36
    %v129 = vadd.f32 %v128, %v37
    %v130 = vadd.f32 %v129, %v38
    %v131 = vadd.f32 %v130, %v43
    %v132 = vadd.f32 %v131, %v44
    %v133 = vadd.f32 %v132, %v45
    %v134 = vadd.f32 %v133, %v46
    %v135 = vadd.f32 %v134, %v51
    %v136 = vadd.f32 %v135, %v52
    %v137 = vadd.f32 %v136, %v53
    %v138 = vadd.f32 %v137, %v54
    %v139 = vadd.f32 %v138, %v59
    %v140 = vadd.f32 %v139, %v60
    %v141 = vadd.f32 %v140, %v61
    %v142 = vadd.f32 %v141, %v62
    %v143 = vadd.f32 %v142, %v67
    %v144 = vadd.f32 %v143, %v68
    %v145 = vadd.f32 %v144, %v69
    %v146 = vadd.f32 %v145, %v70
    %v147 = vadd.f32 %v146, %v75
    %v148 = vadd.f32 %v147, %v76
    %v149 = vadd.f32 %v148, %v77
    %v150 = vadd.f32 %v149, %v78
    %v151 = vadd.f32 %v150, %v83
    %v152 = vadd.f32 %v151, %v84
    %v153 = vadd.f32 %v152, %v85
    %v154 = vadd.f32 %v153, %v86
    %v155 = vadd.f32 %v154, %v91
    %v156 = vadd.f32 %v155, %v92
    %v157 = vadd.f32 %v156, %v93
    %v158 = vadd.f32 %v157, %v94
    %159 = vadd.xlane.f32.xlu0 %v158
    %v160 = vpop.xlane.xlu0 %159
    %v161 = vmul.f32 %v127, 0.00024414063
    %v162 = vmul.f32 %v160, 0.00024414063
    %v163 = vsub.f32 %v31, %v161
    %v164 = vsub.f32 %v32, %v161
    %v165 = vsub.f32 %v33, %v161
    %v166 = vsub.f32 %v34, %v161
    %v167 = vsub.f32 %v35, %v162
    %v168 = vsub.f32 %v36, %v162
    %v169 = vsub.f32 %v37, %v162
    %v170 = vsub.f32 %v38, %v162
    %v171 = vsub.f32 %v39, %v161
    %v172 = vsub.f32 %v40, %v161
    %v173 = vsub.f32 %v41, %v161
    %v174 = vsub.f32 %v42, %v161
    %v175 = vsub.f32 %v43, %v162
    %v176 = vsub.f32 %v44, %v162
    %v177 = vsub.f32 %v45, %v162
    %v178 = vsub.f32 %v46, %v162
    %v179 = vsub.f32 %v47, %v161
    %v180 = vsub.f32 %v48, %v161
    %v181 = vsub.f32 %v49, %v161
    %v182 = vsub.f32 %v50, %v161
    %v183 = vsub.f32 %v51, %v162
    %v184 = vsub.f32 %v52, %v162
    %v185 = vsub.f32 %v53, %v162
    %v186 = vsub.f32 %v54, %v162
    %v187 = vsub.f32 %v55, %v161
    %v188 = vsub.f32 %v56, %v161
    %v189 = vsub.f32 %v57, %v161
    %v190 = vsub.f32 %v58, %v161
    %v191 = vsub.f32 %v59, %v162
    %v192 = vsub.f32 %v60, %v162
    %v193 = vsub.f32 %v61, %v162
    %v194 = vsub.f32 %v62, %v162
    %v195 = vsub.f32 %v63, %v161
    %v196 = vsub.f32 %v64, %v161
    %v197 = vsub.f32 %v65, %v161
    %v198 = vsub.f32 %v66, %v161
    %v199 = vsub.f32 %v67, %v162
    %v200 = vsub.f32 %v68, %v162
    %v201 = vsub.f32 %v69, %v162
    %v202 = vsub.f32 %v70, %v162
    %v203 = vsub.f32 %v71, %v161
    %v204 = vsub.f32 %v72, %v161
    %v205 = vsub.f32 %v73, %v161
    %v206 = vsub.f32 %v74, %v161
    %v207 = vsub.f32 %v75, %v162
    %v208 = vsub.f32 %v76, %v162
    %v209 = vsub.f32 %v77, %v162
    %v210 = vsub.f32 %v78, %v162
    %v211 = vsub.f32 %v79, %v161
    %v212 = vsub.f32 %v80, %v161
    %v213 = vsub.f32 %v81, %v161
    %v214 = vsub.f32 %v82, %v161
    %v215 = vsub.f32 %v83, %v162
    %v216 = vsub.f32 %v84, %v162
    %v217 = vsub.f32 %v85, %v162
    %v218 = vsub.f32 %v86, %v162
    %v219 = vsub.f32 %v87, %v161
    %v220 = vsub.f32 %v88, %v161
    %v221 = vsub.f32 %v89, %v161
    %v222 = vsub.f32 %v90, %v161
    %v223 = vsub.f32 %v91, %v162
    %v224 = vsub.f32 %v92, %v162
    %v225 = vsub.f32 %v93, %v162
    %v226 = vsub.f32 %v94, %v162
    %v227 = vmul.f32 %v163, %v163
    %v228 = vmul.f32 %v164, %v164
    %v229 = vmul.f32 %v165, %v165
    %v230 = vmul.f32 %v166, %v166
    %v231 = vmul.f32 %v167, %v167
    %v232 = vmul.f32 %v168, %v168
    %v233 = vmul.f32 %v169, %v169
    %v234 = vmul.f32 %v170, %v170
    %v235 = vmul.f32 %v171, %v171
    %v236 = vmul.f32 %v172, %v172
    %v237 = vmul.f32 %v173, %v173
    %v238 = vmul.f32 %v174, %v174
    %v239 = vmul.f32 %v175, %v175
    %v240 = vmul.f32 %v176, %v176
    %v241 = vmul.f32 %v177, %v177
    %v242 = vmul.f32 %v178, %v178
    %v243 = vmul.f32 %v179, %v179
    %v244 = vmul.f32 %v180, %v180
    %v245 = vmul.f32 %v181, %v181
    %v246 = vmul.f32 %v182, %v182
    %v247 = vmul.f32 %v183, %v183
    %v248 = vmul.f32 %v184, %v184
    %v249 = vmul.f32 %v185, %v185
    %v250 = vmul.f32 %v186, %v186
    %v251 = vmul.f32 %v187, %v187
    %v252 = vmul.f32 %v188, %v188
    %v253 = vmul.f32 %v189, %v189
    %v254 = vmul.f32 %v190, %v190
    %v255 = vmul.f32 %v191, %v191
    %v256 = vmul.f32 %v192, %v192
    %v257 = vmul.f32 %v193, %v193
    %v258 = vmul.f32 %v194, %v194
    %v259 = vmul.f32 %v195, %v195
    %v260 = vmul.f32 %v196, %v196
    %v261 = vmul.f32 %v197, %v197
    %v262 = vmul.f32 %v198, %v198
    %v263 = vmul.f32 %v199, %v199
    %v264 = vmul.f32 %v200, %v200
    %v265 = vmul.f32 %v201, %v201
    %v266 = vmul.f32 %v202, %v202
    %v267 = vmul.f32 %v203, %v203
    %v268 = vmul.f32 %v204, %v204
    %v269 = vmul.f32 %v205, %v205
    %v270 = vmul.f32 %v206, %v206
    %v271 = vmul.f32 %v207, %v207
    %v272 = vmul.f32 %v208, %v208
    %v273 = vmul.f32 %v209, %v209
    %v274 = vmul.f32 %v210, %v210
    %v275 = vmul.f32 %v211, %v211
    %v276 = vmul.f32 %v212, %v212
    %v277 = vmul.f32 %v213, %v213
    %v278 = vmul.f32 %v214, %v214
    %v279 = vmul.f32 %v215, %v215
    %v280 = vmul.f32 %v216, %v216
    %v281 = vmul.f32 %v217, %v217
    %v282 = vmul.f32 %v218, %v218
    %v283 = vmul.f32 %v219, %v219
    %v284 = vmul.f32 %v220, %v220
    %v285 = vmul.f32 %v221, %v221
    %v286 = vmul.f32 %v222, %v222
    %v287 = vmul.f32 %v223, %v223
    %v288 = vmul.f32 %v224, %v224
    %v289 = vmul.f32 %v225, %v225
    %v290 = vmul.f32 %v226, %v226
    %v291 = vadd.f32 %v227, %v228
    %v292 = vadd.f32 %v291, %v229
    %v293 = vadd.f32 %v292, %v230
    %v294 = vadd.f32 %v293, %v235
    %v295 = vadd.f32 %v294, %v236
    %v296 = vadd.f32 %v295, %v237
    %v297 = vadd.f32 %v296, %v238
    %v298 = vadd.f32 %v297, %v243
    %v299 = vadd.f32 %v298, %v244
    %v300 = vadd.f32 %v299, %v245
    %v301 = vadd.f32 %v300, %v246
    %v302 = vadd.f32 %v301, %v251
    %v303 = vadd.f32 %v302, %v252
    %v304 = vadd.f32 %v303, %v253
    %v305 = vadd.f32 %v304, %v254
    %v306 = vadd.f32 %v305, %v259
    %v307 = vadd.f32 %v306, %v260
    %v308 = vadd.f32 %v307, %v261
    %v309 = vadd.f32 %v308, %v262
    %v310 = vadd.f32 %v309, %v267
    %v311 = vadd.f32 %v310, %v268
    %v312 = vadd.f32 %v311, %v269
    %v313 = vadd.f32 %v312, %v270
    %v314 = vadd.f32 %v313, %v275
    %v315 = vadd.f32 %v314, %v276
    %v316 = vadd.f32 %v315, %v277
    %v317 = vadd.f32 %v316, %v278
    %v318 = vadd.f32 %v317, %v283
    %v319 = vadd.f32 %v318, %v284
    %v320 = vadd.f32 %v319, %v285
    %v321 = vadd.f32 %v320, %v286
    %322 = vadd.xlane.f32.xlu0 %v321
    %v323 = vpop.xlane.xlu0 %322
    %v324 = vadd.f32 %v231, %v232
    %v325 = vadd.f32 %v324, %v233
    %v326 = vadd.f32 %v325, %v234
    %v327 = vadd.f32 %v326, %v239
    %v328 = vadd.f32 %v327, %v240
    %v329 = vadd.f32 %v328, %v241
    %v330 = vadd.f32 %v329, %v242
    %v331 = vadd.f32 %v330, %v247
    %v332 = vadd.f32 %v331, %v248
    %v333 = vadd.f32 %v332, %v249
    %v334 = vadd.f32 %v333, %v250
    %v335 = vadd.f32 %v334, %v255
    %v336 = vadd.f32 %v335, %v256
    %v337 = vadd.f32 %v336, %v257
    %v338 = vadd.f32 %v337, %v258
    %v339 = vadd.f32 %v338, %v263
    %v340 = vadd.f32 %v339, %v264
    %v341 = vadd.f32 %v340, %v265
    %v342 = vadd.f32 %v341, %v266
    %v343 = vadd.f32 %v342, %v271
    %v344 = vadd.f32 %v343, %v272
    %v345 = vadd.f32 %v344, %v273
    %v346 = vadd.f32 %v345, %v274
    %v347 = vadd.f32 %v346, %v279
    %v348 = vadd.f32 %v347, %v280
    %v349 = vadd.f32 %v348, %v281
    %v350 = vadd.f32 %v349, %v282
    %v351 = vadd.f32 %v350, %v287
    %v352 = vadd.f32 %v351, %v288
    %v353 = vadd.f32 %v352, %v289
    %v354 = vadd.f32 %v353, %v290
    %355 = vadd.xlane.f32.xlu0 %v354
    %v356 = vpop.xlane.xlu0 %355
    %v357 = vmul.f32 %v323, 0.00024414063
    %v358 = vmul.f32 %v356, 0.00024414063
    %v359 = vadd.f32 %v357, 1e-05
    %v360 = vadd.f32 %v358, 1e-05
    %v361 = vrsqrt.pop %v359
    %v362 = vmul.f32 %v361, %v359
    %v363 = vmul.f32 %v362, %v361
    %v364 = vmul.f32 0.5, %v363
    %v365 = vsub.f32 1.5, %v364
    %v366 = vmul.f32 %v361, %v365
    %vm367 = vweird.f32 %v359
    %vm368 = vweird.f32 %v361
    %vm369 = vmor %vm367, %vm368
    %v370 = vsel %vm369, %v361, %v366
    %v371 = vrsqrt.pop %v360
    %v372 = vmul.f32 %v371, %v360
    %v373 = vmul.f32 %v372, %v371
    %v374 = vmul.f32 0.5, %v373
    %v375 = vsub.f32 1.5, %v374
    %v376 = vmul.f32 %v371, %v375
    %vm377 = vweird.f32 %v360
    %vm378 = vweird.f32 %v371
    %vm379 = vmor %vm377, %vm378
    %v380 = vsel %vm379, %v371, %v376
    %v381 = vld [vmem:[%s1] sm:$0xff]
    %v382 = vld [vmem:[%s1 + $0x8] sm:$0xff]
    %v383 = vmul.f32 %v381, %v370
    %v384 = vmul.f32 %v382, %v380
    %386 = vset.pattern.permute.xlu0 0
    %387 = vperm.xlu0 %386, %v383
    %v388 = vpop.permute.xlu0 %387
    %391 = vset.pattern.permute.xlu0 0
    %392 = vperm.xlu0 %391, %v384
    %v393 = vpop.permute.xlu0 %392
    %v395 = vmul.f32 %v163, %v388
    %v396 = vmul.f32 %v164, %v388
    %v397 = vmul.f32 %v165, %v388
    %v398 = vmul.f32 %v166, %v388
    %v399 = vmul.f32 %v167, %v393
    %v400 = vmul.f32 %v168, %v393
    %v401 = vmul.f32 %v169, %v393
    %v402 = vmul.f32 %v170, %v393
    %v403 = vmul.f32 %v171, %v388
    %v404 = vmul.f32 %v172, %v388
    %v405 = vmul.f32 %v173, %v388
    %v406 = vmul.f32 %v174, %v388
    %v407 = vmul.f32 %v175, %v393
    %v408 = vmul.f32 %v176, %v393
    %v409 = vmul.f32 %v177, %v393
    %v410 = vmul.f32 %v178, %v393
    %v411 = vmul.f32 %v179, %v388
    %v412 = vmul.f32 %v180, %v388
    %v413 = vmul.f32 %v181, %v388
    %v414 = vmul.f32 %v182, %v388
    %v415 = vmul.f32 %v183, %v393
    %v416 = vmul.f32 %v184, %v393
    %v417 = vmul.f32 %v185, %v393
    %v418 = vmul.f32 %v186, %v393
    %v419 = vmul.f32 %v187, %v388
    %v420 = vmul.f32 %v188, %v388
    %v421 = vmul.f32 %v189, %v388
    %v422 = vmul.f32 %v190, %v388
    %v423 = vmul.f32 %v191, %v393
    %v424 = vmul.f32 %v192, %v393
    %v425 = vmul.f32 %v193, %v393
    %v426 = vmul.f32 %v194, %v393
    %v427 = vmul.f32 %v195, %v388
    %v428 = vmul.f32 %v196, %v388
    %v429 = vmul.f32 %v197, %v388
    %v430 = vmul.f32 %v198, %v388
    %v431 = vmul.f32 %v199, %v393
    %v432 = vmul.f32 %v200, %v393
    %v433 = vmul.f32 %v201, %v393
    %v434 = vmul.f32 %v202, %v393
    %v435 = vmul.f32 %v203, %v388
    %v436 = vmul.f32 %v204, %v388
    %v437 = vmul.f32 %v205, %v388
    %v438 = vmul.f32 %v206, %v388
    %v439 = vmul.f32 %v207, %v393
    %v440 = vmul.f32 %v208, %v393
    %v441 = vmul.f32 %v209, %v393
    %v442 = vmul.f32 %v210, %v393
    %v443 = vmul.f32 %v211, %v388
    %v444 = vmul.f32 %v212, %v388
    %v445 = vmul.f32 %v213, %v388
    %v446 = vmul.f32 %v214, %v388
    %v447 = vmul.f32 %v215, %v393
    %v448 = vmul.f32 %v216, %v393
    %v449 = vmul.f32 %v217, %v393
    %v450 = vmul.f32 %v218, %v393
    %v451 = vmul.f32 %v219, %v388
    %v452 = vmul.f32 %v220, %v388
    %v453 = vmul.f32 %v221, %v388
    %v454 = vmul.f32 %v222, %v388
    %v455 = vmul.f32 %v223, %v393
    %v456 = vmul.f32 %v224, %v393
    %v457 = vmul.f32 %v225, %v393
    %v458 = vmul.f32 %v226, %v393
    %v459 = vld [vmem:[%s2] sm:$0xff]
    %v460 = vld [vmem:[%s2 + $0x8] sm:$0xff]
    %462 = vset.pattern.permute.xlu0 0
    %463 = vperm.xlu0 %462, %v459
    %v464 = vpop.permute.xlu0 %463
    %467 = vset.pattern.permute.xlu0 0
    %468 = vperm.xlu0 %467, %v460
    %v469 = vpop.permute.xlu0 %468
    %v471 = vadd.f32 %v395, %v464
    %v472 = vadd.f32 %v396, %v464
    %v473 = vadd.f32 %v397, %v464
    %v474 = vadd.f32 %v398, %v464
    %v475 = vadd.f32 %v399, %v469
    %v476 = vadd.f32 %v400, %v469
    %v477 = vadd.f32 %v401, %v469
    %v478 = vadd.f32 %v402, %v469
    %v479 = vadd.f32 %v403, %v464
    %v480 = vadd.f32 %v404, %v464
    %v481 = vadd.f32 %v405, %v464
    %v482 = vadd.f32 %v406, %v464
    %v483 = vadd.f32 %v407, %v469
    %v484 = vadd.f32 %v408, %v469
    %v485 = vadd.f32 %v409, %v469
    %v486 = vadd.f32 %v410, %v469
    %v487 = vadd.f32 %v411, %v464
    %v488 = vadd.f32 %v412, %v464
    %v489 = vadd.f32 %v413, %v464
    %v490 = vadd.f32 %v414, %v464
    %v491 = vadd.f32 %v415, %v469
    %v492 = vadd.f32 %v416, %v469
    %v493 = vadd.f32 %v417, %v469
    %v494 = vadd.f32 %v418, %v469
    %v495 = vadd.f32 %v419, %v464
    %v496 = vadd.f32 %v420, %v464
    %v497 = vadd.f32 %v421, %v464
    %v498 = vadd.f32 %v422, %v464
    %v499 = vadd.f32 %v423, %v469
    %v500 = vadd.f32 %v424, %v469
    %v501 = vadd.f32 %v425, %v469
    %v502 = vadd.f32 %v426, %v469
    %v503 = vadd.f32 %v427, %v464
    %v504 = vadd.f32 %v428, %v464
    %v505 = vadd.f32 %v429, %v464
    %v506 = vadd.f32 %v430, %v464
    %v507 = vadd.f32 %v431, %v469
    %v508 = vadd.f32 %v432, %v469
    %v509 = vadd.f32 %v433, %v469
    %v510 = vadd.f32 %v434, %v469
    %v511 = vadd.f32 %v435, %v464
    %v512 = vadd.f32 %v436, %v464
    %v513 = vadd.f32 %v437, %v464
    %v514 = vadd.f32 %v438, %v464
    %v515 = vadd.f32 %v439, %v469
    %v516 = vadd.f32 %v440, %v469
    %v517 = vadd.f32 %v441, %v469
    %v518 = vadd.f32 %v442, %v469
    %v519 = vadd.f32 %v443, %v464
    %v520 = vadd.f32 %v444, %v464
    %v521 = vadd.f32 %v445, %v464
    %v522 = vadd.f32 %v446, %v464
    %v523 = vadd.f32 %v447, %v469
    %v524 = vadd.f32 %v448, %v469
    %v525 = vadd.f32 %v449, %v469
    %v526 = vadd.f32 %v450, %v469
    %v527 = vadd.f32 %v451, %v464
    %v528 = vadd.f32 %v452, %v464
    %v529 = vadd.f32 %v453, %v464
    %v530 = vadd.f32 %v454, %v464
    %v531 = vadd.f32 %v455, %v469
    %v532 = vadd.f32 %v456, %v469
    %v533 = vadd.f32 %v457, %v469
    %v534 = vadd.f32 %v458, %v469
    %535 = vst [vmem:[#allocation5] sm:$0xff] %v471
    %536 = vst [vmem:[#allocation5 + $0x8] sm:$0xff] %v472
    %537 = vst [vmem:[#allocation5 + $0x10] sm:$0xff] %v473
    %538 = vst [vmem:[#allocation5 + $0x18] sm:$0xff] %v474
    %539 = vst [vmem:[#allocation5 + $0x20] sm:$0xff] %v475
    %540 = vst [vmem:[#allocation5 + $0x28] sm:$0xff] %v476
    %541 = vst [vmem:[#allocation5 + $0x30] sm:$0xff] %v477
    %542 = vst [vmem:[#allocation5 + $0x38] sm:$0xff] %v478
    %543 = vst [vmem:[#allocation5 + $0x40] sm:$0xff] %v479
    %544 = vst [vmem:[#allocation5 + $0x48] sm:$0xff] %v480
    %545 = vst [vmem:[#allocation5 + $0x50] sm:$0xff] %v481
    %546 = vst [vmem:[#allocation5 + $0x58] sm:$0xff] %v482
    %547 = vst [vmem:[#allocation5 + $0x60] sm:$0xff] %v483
    %548 = vst [vmem:[#allocation5 + $0x68] sm:$0xff] %v484
    %549 = vst [vmem:[#allocation5 + $0x70] sm:$0xff] %v485
    %550 = vst [vmem:[#allocation5 + $0x78] sm:$0xff] %v486
    %551 = vst [vmem:[#allocation5 + $0x80] sm:$0xff] %v487
    %552 = vst [vmem:[#allocation5 + $0x88] sm:$0xff] %v488
    %553 = vst [vmem:[#allocation5 + $0x90] sm:$0xff] %v489
    %554 = vst [vmem:[#allocation5 + $0x98] sm:$0xff] %v490
    %555 = vst [vmem:[#allocation5 + $0xa0] sm:$0xff] %v491
    %556 = vst [vmem:[#allocation5 + $0xa8] sm:$0xff] %v492
    %557 = vst [vmem:[#allocation5 + $0xb0] sm:$0xff] %v493
    %558 = vst [vmem:[#allocation5 + $0xb8] sm:$0xff] %v494
    %559 = vst [vmem:[#allocation5 + $0xc0] sm:$0xff] %v495
    %560 = vst [vmem:[#allocation5 + $0xc8] sm:$0xff] %v496
    %561 = vst [vmem:[#allocation5 + $0xd0] sm:$0xff] %v497
    %562 = vst [vmem:[#allocation5 + $0xd8] sm:$0xff] %v498
    %563 = vst [vmem:[#allocation5 + $0xe0] sm:$0xff] %v499
    %564 = vst [vmem:[#allocation5 + $0xe8] sm:$0xff] %v500
    %565 = vst [vmem:[#allocation5 + $0xf0] sm:$0xff] %v501
    %566 = vst [vmem:[#allocation5 + $0xf8] sm:$0xff] %v502
    %567 = vst [vmem:[#allocation5 + $0x100] sm:$0xff] %v503
    %568 = vst [vmem:[#allocation5 + $0x108] sm:$0xff] %v504
    %569 = vst [vmem:[#allocation5 + $0x110] sm:$0xff] %v505
    %570 = vst [vmem:[#allocation5 + $0x118] sm:$0xff] %v506
    %571 = vst [vmem:[#allocation5 + $0x120] sm:$0xff] %v507
    %572 = vst [vmem:[#allocation5 + $0x128] sm:$0xff] %v508
    %573 = vst [vmem:[#allocation5 + $0x130] sm:$0xff] %v509
    %574 = vst [vmem:[#allocation5 + $0x138] sm:$0xff] %v510
    %575 = vst [vmem:[#allocation5 + $0x140] sm:$0xff] %v511
    %576 = vst [vmem:[#allocation5 + $0x148] sm:$0xff] %v512
    %577 = vst [vmem:[#allocation5 + $0x150] sm:$0xff] %v513
    %578 = vst [vmem:[#allocation5 + $0x158] sm:$0xff] %v514
    %579 = vst [vmem:[#allocation5 + $0x160] sm:$0xff] %v515
    %580 = vst [vmem:[#allocation5 + $0x168] sm:$0xff] %v516
    %581 = vst [vmem:[#allocation5 + $0x170] sm:$0xff] %v517
    %582 = vst [vmem:[#allocation5 + $0x178] sm:$0xff] %v518
    %583 = vst [vmem:[#allocation5 + $0x180] sm:$0xff] %v519
    %584 = vst [vmem:[#allocation5 + $0x188] sm:$0xff] %v520
    %585 = vst [vmem:[#allocation5 + $0x190] sm:$0xff] %v521
    %586 = vst [vmem:[#allocation5 + $0x198] sm:$0xff] %v522
    %587 = vst [vmem:[#allocation5 + $0x1a0] sm:$0xff] %v523
    %588 = vst [vmem:[#allocation5 + $0x1a8] sm:$0xff] %v524
    %589 = vst [vmem:[#allocation5 + $0x1b0] sm:$0xff] %v525
    %590 = vst [vmem:[#allocation5 + $0x1b8] sm:$0xff] %v526
    %591 = vst [vmem:[#allocation5 + $0x1c0] sm:$0xff] %v527
    %592 = vst [vmem:[#allocation5 + $0x1c8] sm:$0xff] %v528
    %593 = vst [vmem:[#allocation5 + $0x1d0] sm:$0xff] %v529
    %594 = vst [vmem:[#allocation5 + $0x1d8] sm:$0xff] %v530
    %595 = vst [vmem:[#allocation5 + $0x1e0] sm:$0xff] %v531
    %596 = vst [vmem:[#allocation5 + $0x1e8] sm:$0xff] %v532
    %597 = vst [vmem:[#allocation5 + $0x1f0] sm:$0xff] %v533
    %598 = vst [vmem:[#allocation5 + $0x1f8] sm:$0xff] %v534
    // Predicated region
    $region18: #{tpu_custom_call.1} parent=1 // pred_check
      _
    $region19: #{tpu_custom_call.1} parent=1 // pred_check_branch
      %600 = sbr.rel (0) target = $region21
    $region20: #{tpu_custom_call.1} parent=1 // pred_region
      %602 = vsyncadd [#allocation4], 0
      %s603 = sshll.u32 [#allocation5], 4
      %s604 = int_to_ptr.vmem [resolvable:$true] %s603
      %s605 = sshll.u32 %s3, 4
      %s606 = int_to_ptr.hbm [resolvable:$true] %s605
      %611 = dma.vmem_to_hbm [thread:$0]  %s604, 8192, %s606, [#allocation4], 512, 512, 32
    $region21: #{tpu_custom_call.1} parent=1 // pred_fallthru
      _
    // Predicated region
    $region22: #{tpu_custom_call.1} parent=1 // pred_check
      _
    $region23: #{tpu_custom_call.1} parent=1 // pred_check_branch
      %613 = sbr.rel (0) target = $region25
    $region24: #{tpu_custom_call.1} parent=1 // pred_region
      %615 = dma.done [#allocation4], 8192
    $region25: #{tpu_custom_call.1} parent=1 // pred_fallthru
      _
    %616 = vsyncpa [#allocation3], 1
    %617 = vsyncpa [#allocation4], 1

</llo_original>
